<compile_context>
chip_gen: v6e
topology: v6e:2x2x1
jax: 0.10.0
libtpu: 0.0.40
codegen_flags: <defaults>
</compile_context>

<pallas_src>
from math import sqrt

import jax
import jax.numpy as jnp
from jax import lax
from jax.experimental import pallas as pl
from jax.experimental.pallas import tpu as pltpu

_LANE = 128
_SUBLANE = 8


# ----------------------------- kernels ------------------------------------ #

def _noisy_train_split_kernel(x_ref, wmu_ref, wsig_ref, eps_in_ref,
                              eps_out_ref, bias_ref, o_ref):
    """Memory-bound (small batch): never materialise the (TN, K) noisy weight.
    y = x@Wmu^T + ((x*eps_in)@Wsig^T)*eps_out + noisy_bias."""
    nt = (((1,), (1,)), ((), ()))                         # contract last dim vs last dim
    x = x_ref[...]
    xs = (x * eps_in_ref[...]).astype(x.dtype)
    y_mu = lax.dot_general(x, wmu_ref[...], nt, preferred_element_type=jnp.float32)
    y_sig = lax.dot_general(xs, wsig_ref[...], nt, preferred_element_type=jnp.float32)
    o_ref[...] = (y_mu + y_sig * eps_out_ref[...] + bias_ref[...]).astype(o_ref.dtype)


def _noisy_train_fused_kernel(x_ref, wmu_ref, wsig_ref, eps_in_ref,
                              eps_out_ref, bias_ref, o_ref):
    """MXU-bound (large batch): single matmul on the fused noisy weight."""
    nt = (((1,), (1,)), ((), ()))
    w = wmu_ref[...] + wsig_ref[...] * (eps_out_ref[...] * eps_in_ref[...])
    y = lax.dot_general(x_ref[...], w, nt, preferred_element_type=jnp.float32)
    o_ref[...] = (y + bias_ref[...]).astype(o_ref.dtype)


def _mu_linear_kernel(x_ref, wmu_ref, bias_ref, o_ref):
    nt = (((1,), (1,)), ((), ()))
    y = lax.dot_general(x_ref[...], wmu_ref[...], nt, preferred_element_type=jnp.float32)
    o_ref[...] = (y + bias_ref[...]).astype(o_ref.dtype)


# ----------------------------- tiling / VMEM ------------------------------- #

def _round_up(v, m):
    return (v + m - 1) // m * m


def _vmem_capacity_bytes():
    try:
        info = pltpu.get_tpu_info()
        cap = getattr(info, "vmem_capacity_bytes", None)
        if cap:
            return int(cap)
    except Exception:
        pass
    return 64 << 20          # conservative fallback: v7x per-TensorCore VMEM


def _working_set_bytes(tb, tn, in_pad, w_bytes, x_bytes, o_bytes,
                       n_weight_streams, fused):
    wt = 2 * n_weight_streams * tn * in_pad * w_bytes     # double-buffered weight streams
    xb = 2 * tb * in_pad * x_bytes                        # double-buffered x tile
    ob = 2 * tb * tn * o_bytes                            # double-buffered output tile
    small = 2 * (in_pad + 3 * tn) * 4                     # eps_in / eps_out / bias rows
    if fused:
        tmp = tn * in_pad * 4 + tb * tn * 4               # noisy-weight temp + f32 result
    else:
        tmp = tb * in_pad * 4 + 2 * tb * tn * 4           # (x*eps_in) temp + two f32 results
    return wt + xb + ob + small + tmp


def _choose_tiles(batch, in_pad, out_pad, w_bytes, x_bytes, o_bytes,
                  n_weight_streams, fused, budget):
    """Largest (tb, tn) whose full working set fits the VMEM budget."""
    tn_candidates = [t for t in range(_LANE, out_pad + 1, _LANE) if out_pad % t == 0]
    tb = min(_round_up(max(batch, 1), _SUBLANE), 256)
    while True:
        best = None
        for t in tn_candidates:
            if _working_set_bytes(tb, t, in_pad, w_bytes, x_bytes, o_bytes,
                                  n_weight_streams, fused) <= budget:
                best = t
        if best is not None:
            return tb, best, False
        if tb <= _SUBLANE:
            # Even the minimum tile exceeds the budget (very large in_features).
            # TODO(synk): add a K-reduction grid axis ("arbitrary", f32 VMEM
            # accumulator) so TN can stay large instead of over-allocating VMEM.
            return _SUBLANE, _LANE, True
        tb = max(_SUBLANE, tb // 2)


# ----------------------------- wrapper ------------------------------------- #

def noisy_linear_forward(x, weight_mu, weight_sigma, bias_mu, bias_sigma,
                         eps_in, eps_out, *, training=True):
    """Pallas-backed NoisyLinear forward.

    x: (..., in_f); weight_*: (out_f, in_f); bias_*: (out_f,);
    eps_in: (in_f,); eps_out: (out_f,)  [weight_epsilon == outer(eps_out, eps_in),
    bias_epsilon == eps_out, exactly as produced by reset_noise()].
    """
    orig_lead = x.shape[:-1]
    in_f = x.shape[-1]
    out_f = weight_mu.shape[0]
    x2 = x.reshape(-1, in_f)
    batch = x2.shape[0]

    x_bytes = jnp.dtype(x.dtype).itemsize
    w_bytes = jnp.dtype(weight_mu.dtype).itemsize
    o_bytes = x_bytes

    in_pad = _round_up(in_f, _LANE)        # lane-dense contraction dim, full MXU K
    out_pad = _round_up(out_f, _LANE)      # lane-dense output stores

    # Generation-aware VMEM budget (v7x: 64 MiB, v5e/v6e: 128 MiB physical).
    vmem_cap = _vmem_capacity_bytes()
    vmem_limit = min(int(0.75 * vmem_cap), 96 << 20)
    budget = vmem_limit - (2 << 20)

    n_weight_streams = 2 if training else 1
    # Fused noisy-weight form only when the batch is large enough to be MXU-bound;
    # otherwise the split form avoids the (TN, K) temporary and 3 VPU tile passes.
    fused = training and batch >= 256

    tb, tn, overflow = _choose_tiles(batch, in_pad, out_pad, w_bytes, x_bytes,
                                     o_bytes, n_weight_streams, fused, budget)
    if overflow:
        need = _working_set_bytes(tb, tn, in_pad, w_bytes, x_bytes, o_bytes,
                                  n_weight_streams, fused)
        vmem_limit = max(vmem_limit, min(int(0.9 * vmem_cap), need + (2 << 20)))

    b_pad = _round_up(batch, tb)
    n_b = b_pad // tb
    n_out = out_pad // tn
    # Megacore: ensure >= 2 parallel grid steps when TN can be split (v7x: 2 TCs).
    if n_out * n_b == 1 and tn % 256 == 0:
        tn //= 2
        n_out = out_pad // tn

    # --- zero-padding (padded rows/cols contribute exactly 0) ---
    pad_b, pad_k, pad_n = b_pad - batch, in_pad - in_f, out_pad - out_f
    if pad_b or pad_k:
        x2 = jnp.pad(x2, ((0, pad_b), (0, pad_k)))
    if pad_k or pad_n:
        weight_mu = jnp.pad(weight_mu, ((0, pad_n), (0, pad_k)))
    bias_mu_p = jnp.pad(bias_mu, (0, pad_n)) if pad_n else bias_mu

    # Grid: out tiles outer, batch tiles inner. The weight block index depends only
    # on the out index, so weights are NOT re-streamed across the inner batch steps.
    grid = (n_out, n_b)
    x_spec = pl.BlockSpec((tb, in_pad), lambda j, b: (b, 0))
    w_spec = pl.BlockSpec((tn, in_pad), lambda j, b: (j, 0))
    row_n_spec = pl.BlockSpec((1, tn), lambda j, b: (0, j))        # bias / eps_out rows
    eps_in_spec = pl.BlockSpec((1, in_pad), lambda j, b: (0, 0))   # grid-invariant
    eps_out_col_spec = pl.BlockSpec((tn, 1), lambda j, b: (j, 0))
    out_spec = pl.BlockSpec((tb, tn), lambda j, b: (b, j))

    compiler_params = pltpu.CompilerParams(
        dimension_semantics=("parallel", "parallel"),
        vmem_limit_bytes=int(vmem_limit))

    if training:
        if pad_k or pad_n:
            weight_sigma = jnp.pad(weight_sigma, ((0, pad_n), (0, pad_k)))
        eps_in_p = (jnp.pad(eps_in, (0, pad_k)) if pad_k else eps_in).reshape(1, in_pad)
        eps_out_p = jnp.pad(eps_out, (0, pad_n)) if pad_n else eps_out
        bias_sigma_p = jnp.pad(bias_sigma, (0, pad_n)) if pad_n else bias_sigma
        # Pre-fuse the noisy bias on the host side: one (1, out_pad) stream.
        noisy_bias = (bias_mu_p + bias_sigma_p * eps_out_p).reshape(1, out_pad)

        bytes_accessed = (x_bytes * b_pad * in_pad * n_out
                          + w_bytes * 2 * out_pad * in_pad
                          + 4 * (in_pad + 2 * out_pad)
                          + o_bytes * b_pad * out_pad)
        flops = (2 if fused else 4) * b_pad * in_pad * out_pad
        cost = pl.CostEstimate(flops=int(flops), transcendentals=0,
                               bytes_accessed=int(bytes_accessed))

        if fused:
            kernel = _noisy_train_fused_kernel
            eps_out_arg = eps_out_p.reshape(out_pad, 1)
            eps_out_spec = eps_out_col_spec
        else:
            kernel = _noisy_train_split_kernel
            eps_out_arg = eps_out_p.reshape(1, out_pad)
            eps_out_spec = row_n_spec

        y = pl.pallas_call(
            kernel,
            out_shape=jax.ShapeDtypeStruct((b_pad, out_pad), x.dtype),
            grid_spec=pltpu.PrefetchScalarGridSpec(
                num_scalar_prefetch=0,
                grid=grid,
                in_specs=[x_spec, w_spec, w_spec, eps_in_spec, eps_out_spec,
                          row_n_spec],
                out_specs=out_spec,
            ),
            compiler_params=compiler_params,
            cost_estimate=cost,
        )(x2, weight_mu, weight_sigma, eps_in_p, eps_out_arg, noisy_bias)
    else:
        bytes_accessed = (x_bytes * b_pad * in_pad * n_out
                          + w_bytes * out_pad * in_pad
                          + 4 * out_pad + o_bytes * b_pad * out_pad)
        cost = pl.CostEstimate(flops=2 * b_pad * in_pad * out_pad,
                               transcendentals=0,
                               bytes_accessed=int(bytes_accessed))
        y = pl.pallas_call(
            _mu_linear_kernel,
            out_shape=jax.ShapeDtypeStruct((b_pad, out_pad), x.dtype),
            grid_spec=pltpu.PrefetchScalarGridSpec(
                num_scalar_prefetch=0,
                grid=grid,
                in_specs=[x_spec, w_spec, row_n_spec],
                out_specs=out_spec,
            ),
            compiler_params=compiler_params,
            cost_estimate=cost,
        )(x2, weight_mu, bias_mu_p.reshape(1, out_pad))

    y = y[:batch, :out_f]
    return y.reshape(*orig_lead, out_f)


# ------------------------ init (reset_parameters/noise) -------------------- #

def _scale_noise(key, size):
    # torch: x.sign() * x.abs().sqrt()  with x ~ N(0, 1)
    x = jax.random.normal(key, (size,), dtype=jnp.float32)
    return jnp.sign(x) * jnp.sqrt(jnp.abs(x))


def init_noisy_linear(key, in_features, out_features, std_init=0.5):
    """JAX re-implementation of reset_parameters() + reset_noise()."""
    k_wmu, k_bmu, k_ein, k_eout = jax.random.split(key, 4)
    mu_range = 1.0 / sqrt(in_features)

    weight_mu = jax.random.uniform(
        k_wmu, (out_features, in_features), minval=-mu_range, maxval=mu_range,
        dtype=jnp.float32)
    bias_mu = jax.random.uniform(
        k_bmu, (out_features,), minval=-mu_range, maxval=mu_range,
        dtype=jnp.float32)
    weight_sigma = jnp.full((out_features, in_features),
                            std_init / sqrt(in_features), dtype=jnp.float32)
    bias_sigma = jnp.full((out_features,),
                          std_init / sqrt(out_features), dtype=jnp.float32)

    eps_in = _scale_noise(k_ein, in_features)
    eps_out = _scale_noise(k_eout, out_features)

    return dict(weight_mu=weight_mu, weight_sigma=weight_sigma,
                bias_mu=bias_mu, bias_sigma=bias_sigma,
                eps_in=eps_in, eps_out=eps_out)


def _reference_forward(x, p, training=True):
    if training:
        weight_epsilon = jnp.outer(p["eps_out"], p["eps_in"])  # epsilon_out.ger(epsilon_in)
        w = p["weight_mu"] + p["weight_sigma"] * weight_epsilon
        b = p["bias_mu"] + p["bias_sigma"] * p["eps_out"]
    else:
        w, b = p["weight_mu"], p["bias_mu"]
    return x @ w.T + b


if __name__ == "__main__":
    key = jax.random.PRNGKey(0)
    k_param, k_x, k_xb = jax.random.split(key, 3)

    batch, in_features, out_features = 8, 32, 64
    params = init_noisy_linear(k_param, in_features, out_features, std_init=0.5)
    x = jax.random.normal(k_x, (batch, in_features), dtype=jnp.float32)

    def fwd(xx, training):
        return noisy_linear_forward(
            xx, params["weight_mu"], params["weight_sigma"],
            params["bias_mu"], params["bias_sigma"],
            params["eps_in"], params["eps_out"], training=training)

    # Small-batch training forward: split (no materialised noisy weight) kernel.
    y = jax.block_until_ready(fwd(x, True))
    # Eval forward: mu-only kernel.
    y_eval = jax.block_until_ready(fwd(x, False))
    # Large-batch training forward: fused kernel + batch-tiled 2-step grid.
    x_big = jax.random.normal(k_xb, (512, in_features), dtype=jnp.float32)
    y_big = jax.block_until_ready(fwd(x_big, True))

    # Verify against plain-JAX reference.
    ref_train = _reference_forward(x, params, training=True)
    ref_eval = _reference_forward(x, params, training=False)
    ref_big = _reference_forward(x_big, params, training=True)
    assert y.shape == (batch, out_features)
    assert y_eval.shape == (batch, out_features)
    assert y_big.shape == (512, out_features)
    assert jnp.allclose(y, ref_train, atol=1e-5, rtol=1e-5)
    assert jnp.allclose(y_eval, ref_eval, atol=1e-5, rtol=1e-5)
    assert jnp.allclose(y_big, ref_big, atol=1e-4, rtol=1e-4)

    print("KERNEL_OK")
</pallas_src>

<mosaic_0001>
module attributes {stable_mosaic.version = 11 : i64} {
  func.func @_noisy_train_split_kernel(%arg0: i32, %arg1: i32, %arg2: memref<8x128xf32, #tpu.memory_space<vmem>>, %arg3: memref<128x128xf32, #tpu.memory_space<vmem>>, %arg4: memref<128x128xf32, #tpu.memory_space<vmem>>, %arg5: memref<1x128xf32, #tpu.memory_space<vmem>>, %arg6: memref<1x128xf32, #tpu.memory_space<vmem>>, %arg7: memref<1x128xf32, #tpu.memory_space<vmem>>, %arg8: memref<8x128xf32, #tpu.memory_space<vmem>>) attributes {dimension_semantics = [#tpu.dimension_semantics<parallel>, #tpu.dimension_semantics<parallel>], iteration_bounds = array<i64: 1, 1>, scalar_prefetch = 0 : i64, scratch_operands = 0 : i64, tpu.core_type = #tpu.core_type<tc>, window_params = [{transform_indices = @transform_0, window_bounds = array<i64: 8, 128>}, {transform_indices = @transform_1, window_bounds = array<i64: 128, 128>}, {transform_indices = @transform_2, window_bounds = array<i64: 128, 128>}, {pipeline_mode = #tpu.pipeline_mode<synchronous>, transform_indices = @transform_3, window_bounds = array<i64: 1, 128>}, {transform_indices = @transform_4, window_bounds = array<i64: 1, 128>}, {transform_indices = @transform_5, window_bounds = array<i64: 1, 128>}, {transform_indices = @transform_6, window_bounds = array<i64: 8, 128>}]} {
    %c0 = arith.constant 0 : index
    %c0_0 = arith.constant 0 : index
    %0 = vector.load %arg2[%c0, %c0_0] : memref<8x128xf32, #tpu.memory_space<vmem>>, vector<8x128xf32>
    %c0_1 = arith.constant 0 : index
    %c0_2 = arith.constant 0 : index
    %1 = vector.load %arg5[%c0_1, %c0_2] : memref<1x128xf32, #tpu.memory_space<vmem>>, vector<1x128xf32>
    %2 = vector.broadcast %1 : vector<1x128xf32> to vector<8x128xf32>
    %3 = arith.mulf %0, %2 : vector<8x128xf32>
    %c0_3 = arith.constant 0 : index
    %c0_4 = arith.constant 0 : index
    %4 = vector.load %arg3[%c0_3, %c0_4] : memref<128x128xf32, #tpu.memory_space<vmem>>, vector<128x128xf32>
    %cst = arith.constant dense<0.000000e+00> : vector<8x128xf32>
    %5 = tpu.matmul %0, %4, %cst {dimension_numbers = #tpu.dot_dimension_numbers<[1], [1], [0], [0], [0, 0, 1, 0], [], []>} : vector<8x128xf32>, vector<128x128xf32>, vector<8x128xf32> -> vector<8x128xf32>
    %c0_5 = arith.constant 0 : index
    %c0_6 = arith.constant 0 : index
    %6 = vector.load %arg4[%c0_5, %c0_6] : memref<128x128xf32, #tpu.memory_space<vmem>>, vector<128x128xf32>
    %cst_7 = arith.constant dense<0.000000e+00> : vector<8x128xf32>
    %7 = tpu.matmul %3, %6, %cst_7 {dimension_numbers = #tpu.dot_dimension_numbers<[1], [1], [0], [0], [0, 0, 1, 0], [], []>} : vector<8x128xf32>, vector<128x128xf32>, vector<8x128xf32> -> vector<8x128xf32>
    %c0_8 = arith.constant 0 : index
    %c0_9 = arith.constant 0 : index
    %8 = vector.load %arg6[%c0_8, %c0_9] : memref<1x128xf32, #tpu.memory_space<vmem>>, vector<1x128xf32>
    %9 = vector.broadcast %8 : vector<1x128xf32> to vector<8x128xf32>
    %10 = arith.mulf %7, %9 : vector<8x128xf32>
    %11 = arith.addf %5, %10 : vector<8x128xf32>
    %c0_10 = arith.constant 0 : index
    %c0_11 = arith.constant 0 : index
    %12 = vector.load %arg7[%c0_10, %c0_11] : memref<1x128xf32, #tpu.memory_space<vmem>>, vector<1x128xf32>
    %13 = vector.broadcast %12 : vector<1x128xf32> to vector<8x128xf32>
    %14 = arith.addf %11, %13 : vector<8x128xf32>
    %c0_12 = arith.constant 0 : index
    %c0_13 = arith.constant 0 : index
    %15 = vector.load %arg8[%c0_12, %c0_13] : memref<8x128xf32, #tpu.memory_space<vmem>>, vector<8x128xf32>
    tpu.vector_store %arg8[%c0_12, %c0_13], %14 {strides = array<i32>} : memref<8x128xf32, #tpu.memory_space<vmem>>, vector<8x128xf32>,
    return
  }
  func.func @transform_0(%arg0: i32, %arg1: i32) -> (i32, i32) {
    %c0_i32 = arith.constant 0 : i32
    %c0_i32_0 = arith.constant 0 : i32
    return %arg1, %c0_i32 : i32, i32
  }
  func.func @transform_1(%arg0: i32, %arg1: i32) -> (i32, i32) {
    %c0_i32 = arith.constant 0 : i32
    %c0_i32_0 = arith.constant 0 : i32
    return %arg0, %c0_i32 : i32, i32
  }
  func.func @transform_2(%arg0: i32, %arg1: i32) -> (i32, i32) {
    %c0_i32 = arith.constant 0 : i32
    %c0_i32_0 = arith.constant 0 : i32
    return %arg0, %c0_i32 : i32, i32
  }
  func.func @transform_3(%arg0: i32, %arg1: i32) -> (i32, i32) {
    %c0_i32 = arith.constant 0 : i32
    %c0_i32_0 = arith.constant 0 : i32
    %c0_i32_1 = arith.constant 0 : i32
    return %c0_i32, %c0_i32_0 : i32, i32
  }
  func.func @transform_4(%arg0: i32, %arg1: i32) -> (i32, i32) {
    %c0_i32 = arith.constant 0 : i32
    %c0_i32_0 = arith.constant 0 : i32
    return %c0_i32, %arg0 : i32, i32
  }
  func.func @transform_5(%arg0: i32, %arg1: i32) -> (i32, i32) {
    %c0_i32 = arith.constant 0 : i32
    %c0_i32_0 = arith.constant 0 : i32
    return %c0_i32, %arg0 : i32, i32
  }
  func.func @transform_6(%arg0: i32, %arg1: i32) -> (i32, i32) {
    %c0_i32 = arith.constant 0 : i32
    return %arg1, %arg0 : i32, i32
  }
}

</mosaic_0001>

<llo_original>
// kernel: tpu_custom_call.1
$region0: #{tpu_custom_call.1}
  #allocation0 [shape = 'u32[]', space=smem, size = 0x4, offset = 0x4, fixed_abs, tag = 'smem constant byte address 0x4 - core index']
  #allocation1 [shape = 'u32[144,128]{1,0:T(1,128)}', space=vmem, size = 0x12000, scoped, tag = 'internal scratch']
  %s0 = inlined_call_operand.hbm [shape: f32[8,128], index: 0, kind: input, shape index: {}]
  %s1 = inlined_call_operand.hbm [shape: f32[128,128], index: 1, kind: input, shape index: {}]
  %s2 = inlined_call_operand.hbm [shape: f32[128,128], index: 2, kind: input, shape index: {}]
  %s3 = inlined_call_operand.vmem [shape: f32[1,128], index: 3, kind: input, shape index: {}]
  %s4 = inlined_call_operand.vmem [shape: f32[1,128], index: 4, kind: input, shape index: {}]
  %s5 = inlined_call_operand.vmem [shape: f32[1,128], index: 5, kind: input, shape index: {}]
  %s6 = inlined_call_operand.hbm [shape: f32[8,128], index: 6, kind: output, shape index: {}]
  %s7 = sld [smem:[#allocation0]]
  $region46: #{tpu_custom_call.1} parent=0
    _
  %s9 = ssub.s32 1, %s7
  %s10 = scalar_select 0, %s9, %s7
  $region1: #{tpu_custom_call.1} parent=0
    #allocation2 [shape = 'u8[4096]{0}', space=vmem, size = 0x1000, scoped, tag = 'input window, operand 0, single buffered']
    #allocation3 [shape = 's32[1]{0}', space=sflag, size = 0x4, scoped, tag = 'scoped memory for tpu_custom_call.1']
    #allocation4 [shape = 's32[1]{0}', space=sflag, size = 0x4, scoped, tag = 'scoped memory for tpu_custom_call.1']
    #allocation5 [shape = 'u8[65536]{0}', space=vmem, size = 0x10000, scoped, tag = 'input window, operand 1, single buffered']
    #allocation6 [shape = 's32[1]{0}', space=sflag, size = 0x4, scoped, tag = 'scoped memory for tpu_custom_call.1']
    #allocation7 [shape = 'u8[65536]{0}', space=vmem, size = 0x10000, scoped, tag = 'input window, operand 2, single buffered']
    #allocation8 [shape = 'u8[4096]{0}', space=vmem, size = 0x1000, scoped, tag = 'output window, operand 0, single buffered']
    %11 = vsyncpa [#allocation3], 0
    %12 = vsyncpa [#allocation6], 0
    %13 = vsyncpa [#allocation4], 0
    // Predicated region
    $region2: #{tpu_custom_call.1} parent=1 // pred_check
      _
    $region3: #{tpu_custom_call.1} parent=1 // pred_check_branch
      %15 = sbr.rel (0) target = $region5
    $region4: #{tpu_custom_call.1} parent=1 // pred_region
      %s17 = ssub.s32 128, 128
      %18 = vsyncadd [#allocation3], %s17
      %s20 = sshll.u32 [#allocation2], 4
      %s21 = int_to_ptr.vmem [resolvable:$true] %s20
      %23 = dma.hbm_to_vmem [thread:$0]  %s0, 128, %s21, [#allocation3]
    $region5: #{tpu_custom_call.1} parent=1 // pred_fallthru
      _
    // Predicated region
    $region6: #{tpu_custom_call.1} parent=1 // pred_check
      _
    $region7: #{tpu_custom_call.1} parent=1 // pred_check_branch
      %25 = sbr.rel (0) target = $region9
    $region8: #{tpu_custom_call.1} parent=1 // pred_region
      %s27 = ssub.s32 2048, 2048
      %28 = vsyncadd [#allocation6], %s27
      %s29 = sshll.u32 [#allocation5], 4
      %s30 = int_to_ptr.vmem [resolvable:$true] %s29
      %35 = dma.hbm_to_vmem [thread:$0]  %s1, 2048, %s30, [#allocation6], 128, 128, 8
    $region9: #{tpu_custom_call.1} parent=1 // pred_fallthru
      _
    // Predicated region
    $region10: #{tpu_custom_call.1} parent=1 // pred_check
      _
    $region11: #{tpu_custom_call.1} parent=1 // pred_check_branch
      %37 = sbr.rel (0) target = $region13
    $region12: #{tpu_custom_call.1} parent=1 // pred_region
      %s39 = ssub.s32 2048, 2048
      %40 = vsyncadd [#allocation6], %s39
      %s41 = sshll.u32 [#allocation7], 4
      %s42 = int_to_ptr.vmem [resolvable:$true] %s41
      %47 = dma.hbm_to_vmem [thread:$0]  %s2, 2048, %s42, [#allocation6], 128, 128, 8
    $region13: #{tpu_custom_call.1} parent=1 // pred_fallthru
      _
    // Predicated region
    $region14: #{tpu_custom_call.1} parent=1 // pred_check
      _
    $region15: #{tpu_custom_call.1} parent=1 // pred_check_branch
      %49 = sbr.rel (0) target = $region17
    $region16: #{tpu_custom_call.1} parent=1 // pred_region
      _
    $region17: #{tpu_custom_call.1} parent=1 // pred_fallthru
      _
    // Predicated region
    $region18: #{tpu_custom_call.1} parent=1 // pred_check
      _
    $region19: #{tpu_custom_call.1} parent=1 // pred_check_branch
      %51 = sbr.rel (0) target = $region21
    $region20: #{tpu_custom_call.1} parent=1 // pred_region
      _
    $region21: #{tpu_custom_call.1} parent=1 // pred_fallthru
      _
    // Predicated region
    $region22: #{tpu_custom_call.1} parent=1 // pred_check
      _
    $region23: #{tpu_custom_call.1} parent=1 // pred_check_branch
      %53 = sbr.rel (0) target = $region25
    $region24: #{tpu_custom_call.1} parent=1 // pred_region
      _
    $region25: #{tpu_custom_call.1} parent=1 // pred_fallthru
      _
    // Predicated region
    $region26: #{tpu_custom_call.1} parent=1 // pred_check
      _
    $region27: #{tpu_custom_call.1} parent=1 // pred_check_branch
      %55 = sbr.rel (0) target = $region29
    $region28: #{tpu_custom_call.1} parent=1 // pred_region
      %56 = dma.done [#allocation3], 128
    $region29: #{tpu_custom_call.1} parent=1 // pred_fallthru
      _
    // Predicated region
    $region30: #{tpu_custom_call.1} parent=1 // pred_check
      _
    $region31: #{tpu_custom_call.1} parent=1 // pred_check_branch
      %58 = sbr.rel (0) target = $region33
    $region32: #{tpu_custom_call.1} parent=1 // pred_region
      %59 = dma.done [#allocation6], 2048
    $region33: #{tpu_custom_call.1} parent=1 // pred_fallthru
      _
    // Predicated region
    $region34: #{tpu_custom_call.1} parent=1 // pred_check
      _
    $region35: #{tpu_custom_call.1} parent=1 // pred_check_branch
      %61 = sbr.rel (0) target = $region37
    $region36: #{tpu_custom_call.1} parent=1 // pred_region
      %62 = dma.done [#allocation6], 2048
    $region37: #{tpu_custom_call.1} parent=1 // pred_fallthru
      _
    %v63 = vld [vmem:[#allocation2] sm:$0xff]
    %v64 = vld [vmem:[%s3] sm:$0x1]
    %v66 = vlaneseq
    %v67 = vshrl.u32 %v66, 7
    %v68 = vsub.s32 0, %v67
    %v69 = vrot.slane %v64, %v68
    %v71 = vmul.f32 %v63, %v69
    %v72 = vld [vmem:[#allocation5] sm:$0xff]
    %v73 = vld [vmem:[#allocation5 + $0x8] sm:$0xff]
    %v74 = vld [vmem:[#allocation5 + $0x10] sm:$0xff]
    %v75 = vld [vmem:[#allocation5 + $0x18] sm:$0xff]
    %v76 = vld [vmem:[#allocation5 + $0x20] sm:$0xff]
    %v77 = vld [vmem:[#allocation5 + $0x28] sm:$0xff]
    %v78 = vld [vmem:[#allocation5 + $0x30] sm:$0xff]
    %v79 = vld [vmem:[#allocation5 + $0x38] sm:$0xff]
    %v80 = vld [vmem:[#allocation5 + $0x40] sm:$0xff]
    %v81 = vld [vmem:[#allocation5 + $0x48] sm:$0xff]
    %v82 = vld [vmem:[#allocation5 + $0x50] sm:$0xff]
    %v83 = vld [vmem:[#allocation5 + $0x58] sm:$0xff]
    %v84 = vld [vmem:[#allocation5 + $0x60] sm:$0xff]
    %v85 = vld [vmem:[#allocation5 + $0x68] sm:$0xff]
    %v86 = vld [vmem:[#allocation5 + $0x70] sm:$0xff]
    %v87 = vld [vmem:[#allocation5 + $0x78] sm:$0xff]
    %v88 = vld [vmem:[#allocation7] sm:$0xff]
    %v89 = vld [vmem:[#allocation7 + $0x8] sm:$0xff]
    %v90 = vld [vmem:[#allocation7 + $0x10] sm:$0xff]
    %v91 = vld [vmem:[#allocation7 + $0x18] sm:$0xff]
    %v92 = vld [vmem:[#allocation7 + $0x20] sm:$0xff]
    %v93 = vld [vmem:[#allocation7 + $0x28] sm:$0xff]
    %v94 = vld [vmem:[#allocation7 + $0x30] sm:$0xff]
    %v95 = vld [vmem:[#allocation7 + $0x38] sm:$0xff]
    %v96 = vld [vmem:[#allocation7 + $0x40] sm:$0xff]
    %v97 = vld [vmem:[#allocation7 + $0x48] sm:$0xff]
    %v98 = vld [vmem:[#allocation7 + $0x50] sm:$0xff]
    %v99 = vld [vmem:[#allocation7 + $0x58] sm:$0xff]
    %v100 = vld [vmem:[#allocation7 + $0x60] sm:$0xff]
    %v101 = vld [vmem:[#allocation7 + $0x68] sm:$0xff]
    %v102 = vld [vmem:[#allocation7 + $0x70] sm:$0xff]
    %v103 = vld [vmem:[#allocation7 + $0x78] sm:$0xff]
    %104 = vmatprep.subr.mxu0 0.0
    %105 = vmatpush1.xpose.msra.mxu0 %v103
    %106 = vmatprep.subr.mxu0 0.0
    %107 = vmatpush1.xpose.msra.mxu0 %v102
    %108 = vmatprep.subr.mxu0 0.0
    %109 = vmatpush1.xpose.msra.mxu0 %v101
    %110 = vmatprep.subr.mxu0 0.0
    %111 = vmatpush1.xpose.msra.mxu0 %v100
    %112 = vmatprep.subr.mxu0 0.0
    %113 = vmatpush1.xpose.msra.mxu0 %v99
    %114 = vmatprep.subr.mxu0 0.0
    %115 = vmatpush1.xpose.msra.mxu0 %v98
    %116 = vmatprep.subr.mxu0 0.0
    %117 = vmatpush1.xpose.msra.mxu0 %v97
    %118 = vmatprep.subr.mxu0 0.0
    %119 = vmatpush1.xpose.msra.mxu0 %v96
    %120 = vmatprep.subr.mxu0 0.0
    %121 = vmatpush1.xpose.msra.mxu0 %v95
    %122 = vmatprep.subr.mxu0 0.0
    %123 = vmatpush1.xpose.msra.mxu0 %v94
    %124 = vmatprep.subr.mxu0 0.0
    %125 = vmatpush1.xpose.msra.mxu0 %v93
    %126 = vmatprep.subr.mxu0 0.0
    %127 = vmatpush1.xpose.msra.mxu0 %v92
    %128 = vmatprep.subr.mxu0 0.0
    %129 = vmatpush1.xpose.msra.mxu0 %v91
    %130 = vmatprep.subr.mxu0 0.0
    %131 = vmatpush1.xpose.msra.mxu0 %v90
    %132 = vmatprep.subr.mxu0 0.0
    %133 = vmatpush1.xpose.msra.mxu0 %v89
    %134 = vmatprep.subr.mxu0 0.0
    %135 = vmatpush1.xpose.msra.mxu0 %v88
    %136 = vmatprep.subr.mxu0 0.0
    %137 = vmatpush2.xpose.msra.mxu0 0.0
    %138 = vmatprep.subr.mxu0 0.0
    %139 = vmatpush2.xpose.msra.mxu0 0.0
    %140 = vmatprep.subr.mxu0 0.0
    %141 = vmatpush2.xpose.msra.mxu0 0.0
    %142 = vmatprep.subr.mxu0 0.0
    %143 = vmatpush2.xpose.msra.mxu0 0.0
    %144 = vmatprep.subr.mxu0 0.0
    %145 = vmatpush2.xpose.msra.mxu0 0.0
    %146 = vmatprep.subr.mxu0 0.0
    %147 = vmatpush2.xpose.msra.mxu0 0.0
    %148 = vmatprep.subr.mxu0 0.0
    %149 = vmatpush2.xpose.msra.mxu0 0.0
    %150 = vmatprep.subr.mxu0 0.0
    %151 = vmatpush2.xpose.msra.mxu0 0.0
    %152 = vmatprep.subr.mxu0 0.0
    %153 = vmatpush2.xpose.msra.mxu0 0.0
    %154 = vmatprep.subr.mxu0 0.0
    %155 = vmatpush2.xpose.msra.mxu0 0.0
    %156 = vmatprep.subr.mxu0 0.0
    %157 = vmatpush2.xpose.msra.mxu0 0.0
    %158 = vmatprep.subr.mxu0 0.0
    %159 = vmatpush2.xpose.msra.mxu0 0.0
    %160 = vmatprep.subr.mxu0 0.0
    %161 = vmatpush2.xpose.msra.mxu0 0.0
    %162 = vmatprep.subr.mxu0 0.0
    %163 = vmatpush2.xpose.msra.mxu0 0.0
    %164 = vmatprep.subr.mxu0 0.0
    %165 = vmatpush2.xpose.msra.mxu0 0.0
    %166 = vmatprep.subr.mxu0 0.0
    %167 = vmatpush2.xpose.msra.mxu0 0.0
    %168 = vmatprep.mubr.f32.mxu0 0.0
    %169 = vmatmul.mubr.f32.gmra.mxu0 %v71
    %v170 = vpop.f32.mrf.mxu0
    %v171 = vadd.f32 0.0, %v170
    %v172 = vpop.f32.mrf.mxu0
    %173 = vdwg.mxu0
    %v174 = vld [vmem:[%s4] sm:$0x1]
    %v176 = vlaneseq
    %v177 = vshrl.u32 %v176, 7
    %v178 = vsub.s32 0, %v177
    %v179 = vrot.slane %v174, %v178
    %v181 = vmul.f32 %v171, %v179
    %182 = vmatprep.subr.mxu0 0.0
    %183 = vmatpush1.xpose.msra.mxu0 %v87
    %184 = vmatprep.subr.mxu0 0.0
    %185 = vmatpush1.xpose.msra.mxu0 %v86
    %186 = vmatprep.subr.mxu0 0.0
    %187 = vmatpush1.xpose.msra.mxu0 %v85
    %188 = vmatprep.subr.mxu0 0.0
    %189 = vmatpush1.xpose.msra.mxu0 %v84
    %190 = vmatprep.subr.mxu0 0.0
    %191 = vmatpush1.xpose.msra.mxu0 %v83
    %192 = vmatprep.subr.mxu0 0.0
    %193 = vmatpush1.xpose.msra.mxu0 %v82
    %194 = vmatprep.subr.mxu0 0.0
    %195 = vmatpush1.xpose.msra.mxu0 %v81
    %196 = vmatprep.subr.mxu0 0.0
    %197 = vmatpush1.xpose.msra.mxu0 %v80
    %198 = vmatprep.subr.mxu0 0.0
    %199 = vmatpush1.xpose.msra.mxu0 %v79
    %200 = vmatprep.subr.mxu0 0.0
    %201 = vmatpush1.xpose.msra.mxu0 %v78
    %202 = vmatprep.subr.mxu0 0.0
    %203 = vmatpush1.xpose.msra.mxu0 %v77
    %204 = vmatprep.subr.mxu0 0.0
    %205 = vmatpush1.xpose.msra.mxu0 %v76
    %206 = vmatprep.subr.mxu0 0.0
    %207 = vmatpush1.xpose.msra.mxu0 %v75
    %208 = vmatprep.subr.mxu0 0.0
    %209 = vmatpush1.xpose.msra.mxu0 %v74
    %210 = vmatprep.subr.mxu0 0.0
    %211 = vmatpush1.xpose.msra.mxu0 %v73
    %212 = vmatprep.subr.mxu0 0.0
    %213 = vmatpush1.xpose.msra.mxu0 %v72
    %214 = vmatprep.subr.mxu0 0.0
    %215 = vmatpush2.xpose.msra.mxu0 0.0
    %216 = vmatprep.subr.mxu0 0.0
    %217 = vmatpush2.xpose.msra.mxu0 0.0
    %218 = vmatprep.subr.mxu0 0.0
    %219 = vmatpush2.xpose.msra.mxu0 0.0
    %220 = vmatprep.subr.mxu0 0.0
    %221 = vmatpush2.xpose.msra.mxu0 0.0
    %222 = vmatprep.subr.mxu0 0.0
    %223 = vmatpush2.xpose.msra.mxu0 0.0
    %224 = vmatprep.subr.mxu0 0.0
    %225 = vmatpush2.xpose.msra.mxu0 0.0
    %226 = vmatprep.subr.mxu0 0.0
    %227 = vmatpush2.xpose.msra.mxu0 0.0
    %228 = vmatprep.subr.mxu0 0.0
    %229 = vmatpush2.xpose.msra.mxu0 0.0
    %230 = vmatprep.subr.mxu0 0.0
    %231 = vmatpush2.xpose.msra.mxu0 0.0
    %232 = vmatprep.subr.mxu0 0.0
    %233 = vmatpush2.xpose.msra.mxu0 0.0
    %234 = vmatprep.subr.mxu0 0.0
    %235 = vmatpush2.xpose.msra.mxu0 0.0
    %236 = vmatprep.subr.mxu0 0.0
    %237 = vmatpush2.xpose.msra.mxu0 0.0
    %238 = vmatprep.subr.mxu0 0.0
    %239 = vmatpush2.xpose.msra.mxu0 0.0
    %240 = vmatprep.subr.mxu0 0.0
    %241 = vmatpush2.xpose.msra.mxu0 0.0
    %242 = vmatprep.subr.mxu0 0.0
    %243 = vmatpush2.xpose.msra.mxu0 0.0
    %244 = vmatprep.subr.mxu0 0.0
    %245 = vmatpush2.xpose.msra.mxu0 0.0
    %246 = vmatprep.mubr.f32.mxu0 0.0
    %247 = vmatmul.mubr.f32.gmra.mxu0 %v63
    %v248 = vpop.f32.mrf.mxu0
    %v249 = vadd.f32 %v181, %v248
    %v250 = vpop.f32.mrf.mxu0
    %251 = vdwg.mxu0
    %v252 = vld [vmem:[%s5] sm:$0x1]
    %v254 = vlaneseq
    %v255 = vshrl.u32 %v254, 7
    %v256 = vsub.s32 0, %v255
    %v257 = vrot.slane %v252, %v256
    %v259 = vadd.f32 %v249, %v257
    %260 = vst [vmem:[#allocation8] sm:$0xff] %v259
    // Predicated region
    $region38: #{tpu_custom_call.1} parent=1 // pred_check
      _
    $region39: #{tpu_custom_call.1} parent=1 // pred_check_branch
      %262 = sbr.rel (0) target = $region41
    $region40: #{tpu_custom_call.1} parent=1 // pred_region
      %s264 = ssub.s32 128, 128
      %265 = vsyncadd [#allocation4], %s264
      %s267 = sshll.u32 [#allocation8], 4
      %s268 = int_to_ptr.vmem [resolvable:$true] %s267
      %270 = dma.vmem_to_hbm [thread:$0]  %s268, 128, %s6, [#allocation4]
    $region41: #{tpu_custom_call.1} parent=1 // pred_fallthru
      _
    // Predicated region
    $region42: #{tpu_custom_call.1} parent=1 // pred_check
      _
    $region43: #{tpu_custom_call.1} parent=1 // pred_check_branch
      %272 = sbr.rel (0) target = $region45
    $region44: #{tpu_custom_call.1} parent=1 // pred_region
      %273 = dma.done [#allocation4], 128
    $region45: #{tpu_custom_call.1} parent=1 // pred_fallthru
      _
    %274 = vsyncpa [#allocation3], 1
    %275 = vsyncpa [#allocation6], 1
    %276 = vsyncpa [#allocation4], 1

</llo_original>
